<compile_context>
chip_gen: v6e
topology: v6e:2x2x1
jax: 0.10.0
libtpu: 0.0.40
codegen_flags: <defaults>
</compile_context>

<pallas_src>
import numpy as np
import jax
import jax.numpy as jnp
from jax import lax
from jax.experimental import pallas as pl
from jax.experimental.pallas import tpu as pltpu

MAX_ITER = 50          # self.kwargs["max_iter"]
TOL = 1e-4             # self.kwargs["tol"]
TOL_SQ = TOL * TOL


def _deq_kernel(x_ref, w_ref, b_ref, z_ref, res_ref):
    w = w_ref[...]                       # (H, H) loop-invariant weight, in vregs
    bx = b_ref[...] + x_ref[...]         # (B, H) hoisted: broadcast + add once

    def f(z):
        # f(z) = tanh(z @ W + b + x): MXU matmul (pinned full-f32 precision,
        # never a single bf16 pass) + EUP tanh.
        return jnp.tanh(
            jnp.dot(z, w, preferred_element_type=jnp.float32,
                    precision=lax.Precision.HIGHEST) + bx)

    # f.initial_guess() is zeros, so f(x0) = tanh(b + x): no zero-matrix matmul.
    z0 = jnp.tanh(bx)

    # Solver = forward fixed-point iteration (tutorial `forward_iteration`):
    #   f0 = f(x0)
    #   for k in range(max_iter):
    #       x_ = f0; f0 = f(x_)
    #       res = ||f0 - x_|| / (1e-5 + ||f0||)
    #       if res < tol: break
    #   return f0, res
    #
    # Lagged formulation.  Carry = (i, z_old, z_new, nsq, dsq) with the
    # invariants: z_new = f(z_old), and (nsq, dsq) is the squared residual of
    # the PREVIOUS (one-step-older) pair.  Inside one body the matmul for the
    # next iterate and the reduce for the previous residual are independent,
    # so they overlap.  On exit, z_new already equals f(z_solution) -- the
    # module's post-solver application -- and (nsq, dsq) is exactly the
    # residual the reference would report.  f-application count is identical
    # to the reference (<= MAX_ITER + 1 matmuls total).
    def cond(carry):
        i, _, _, nsq, dsq = carry
        return jnp.logical_and(i < MAX_ITER + 1,
                               nsq >= jnp.float32(TOL_SQ) * dsq)

    def body(carry):
        i, z_old, z_new, _, _ = carry
        z_next = f(z_new)                 # MXU: iterate k+1
        d = z_new - z_old                 # VPU/XLU: residual of iterate k (lagged)
        nsq = jnp.sum(d * d)
        dsq = jnp.sum(z_new * z_new)
        return i + jnp.int32(1), z_new, z_next, nsq, dsq

    # (nsq=1, dsq=0) encodes "not converged yet": the first two body steps
    # always run, matching the reference loop which always evaluates >= 1
    # residual (and the pair (x0, z0) can never trigger a false early stop).
    carry0 = (jnp.int32(0), jnp.zeros_like(bx), z0,
              jnp.float32(1.0), jnp.float32(0.0))
    _, _, z_out, nsq, dsq = lax.while_loop(cond, body, carry0)

    # z_out = f(z_solution): the module's `z = self.f(z)` after the solver.
    z_ref[...] = z_out.astype(z_ref.dtype)
    # self.forward_res: last relative residual of the solver.  sqrt/divide run
    # exactly once, off the iteration critical path; 1e-5 guard kept here.
    res_ref[0, 0] = jnp.sqrt(nsq) / (jnp.float32(1e-5) + jnp.sqrt(dsq))
    # TODO(synk): backward_hook / implicit-function backward solve is autograd
    # machinery, not part of the forward pass; not implemented here.


def deq_fixed_point(x, w, b):
    B, H = x.shape
    # Single grid step: the fixed-point solve is one serial dependency chain
    # and at these sizes x, W, b, z all fit in VMEM at once (no tiling/DMA).
    # The module's convergence test is a *global* norm, so the batch is NOT
    # sharded across v7x's two TensorCores (a per-iteration cross-core combine
    # would cost more than an 8-row matmul saves).  If H is ever scaled up,
    # re-derive VMEM against v7x's 64 MiB and single-buffer W.
    z, res = pl.pallas_call(
        _deq_kernel,
        out_shape=(jax.ShapeDtypeStruct((B, H), jnp.float32),
                   jax.ShapeDtypeStruct((1, 1), jnp.float32)),
        grid=(1,),
        in_specs=[pl.BlockSpec((B, H), lambda i: (0, 0)),
                  pl.BlockSpec((H, H), lambda i: (0, 0)),
                  pl.BlockSpec((1, H), lambda i: (0, 0))],
        out_specs=(pl.BlockSpec((B, H), lambda i: (0, 0)),
                   pl.BlockSpec((1, 1), lambda i: (0, 0),
                                memory_space=pltpu.MemorySpace.SMEM)),
        compiler_params=pltpu.CompilerParams(
            dimension_semantics=("arbitrary",)),
    )(x, w, b)
    return z, res


def _reference(x, w, b):
    # pure-JAX reference of the same forward semantics
    def f(z):
        return jnp.tanh(
            jnp.dot(z, w, precision=lax.Precision.HIGHEST) + b + x)
    z = f(jnp.zeros_like(x))
    res = 0.0
    for _ in range(MAX_ITER):
        z_new = f(z)
        res = float(jnp.linalg.norm(z_new - z) /
                    (1e-5 + jnp.linalg.norm(z_new)))
        z = z_new
        if res < TOL:
            break
    return f(z), res


if __name__ == "__main__":
    B, H = 8, 128   # batch, hidden (small, (8,128)-tile aligned)

    key = jax.random.PRNGKey(0)
    kw, kb, kx = jax.random.split(key, 3)
    # scale W so f is a clear contraction (spectral norm ~0.6): the solver
    # converges well inside MAX_ITER and the early exit actually engages.
    w = (0.3 / np.sqrt(H)) * jax.random.normal(kw, (H, H), jnp.float32)
    b = 0.1 * jax.random.normal(kb, (1, H), jnp.float32)
    x = jax.random.normal(kx, (B, H), jnp.float32)

    z, fwd_res = deq_fixed_point(x, w, b)
    z = jax.block_until_ready(z)
    fwd_res = jax.block_until_ready(fwd_res)

    z_ref, res_ref = _reference(x, w, b)
    np.testing.assert_allclose(np.asarray(z), np.asarray(z_ref),
                               rtol=1e-4, atol=1e-4)
    # sanity: the solver converged (early exit engaged), residual is sane
    assert 0.0 <= float(fwd_res[0, 0]) < TOL
    print("KERNEL_OK")
</pallas_src>

<mosaic_0001>
module attributes {stable_mosaic.version = 11 : i64} {
  func.func @_deq_kernel(%arg0: i32, %arg1: memref<8x128xf32, #tpu.memory_space<vmem>>, %arg2: memref<128x128xf32, #tpu.memory_space<vmem>>, %arg3: memref<1x128xf32, #tpu.memory_space<vmem>>, %arg4: memref<8x128xf32, #tpu.memory_space<vmem>>, %arg5: memref<1x1xf32, #tpu.memory_space<smem>>) attributes {dimension_semantics = [#tpu.dimension_semantics<arbitrary>], iteration_bounds = array<i64: 1>, scalar_prefetch = 0 : i64, scratch_operands = 0 : i64, tpu.core_type = #tpu.core_type<tc>, window_params = [{pipeline_mode = #tpu.pipeline_mode<synchronous>, transform_indices = @transform_0, window_bounds = array<i64: 8, 128>}, {pipeline_mode = #tpu.pipeline_mode<synchronous>, transform_indices = @transform_1, window_bounds = array<i64: 128, 128>}, {pipeline_mode = #tpu.pipeline_mode<synchronous>, transform_indices = @transform_2, window_bounds = array<i64: 1, 128>}, {pipeline_mode = #tpu.pipeline_mode<synchronous>, transform_indices = @transform_3, window_bounds = array<i64: 8, 128>}, {transform_indices = @transform_4, window_bounds = array<i64: 1, 1>}]} {
    %c0 = arith.constant 0 : index
    %c0_0 = arith.constant 0 : index
    %0 = vector.load %arg2[%c0, %c0_0] : memref<128x128xf32, #tpu.memory_space<vmem>>, vector<128x128xf32>
    %c0_1 = arith.constant 0 : index
    %c0_2 = arith.constant 0 : index
    %1 = vector.load %arg3[%c0_1, %c0_2] : memref<1x128xf32, #tpu.memory_space<vmem>>, vector<1x128xf32>
    %c0_3 = arith.constant 0 : index
    %c0_4 = arith.constant 0 : index
    %2 = vector.load %arg1[%c0_3, %c0_4] : memref<8x128xf32, #tpu.memory_space<vmem>>, vector<8x128xf32>
    %3 = vector.broadcast %1 : vector<1x128xf32> to vector<8x128xf32>
    %4 = arith.addf %3, %2 : vector<8x128xf32>
    %5 = math.tanh %4 : vector<8x128xf32>
    %cst = arith.constant 0.000000e+00 : f32
    %6 = vector.broadcast %cst : f32 to vector<8x128xf32>
    %c0_i32 = arith.constant 0 : i32
    %cst_5 = arith.constant 1.000000e+00 : f32
    %cst_6 = arith.constant 0.000000e+00 : f32
    %7:5 = scf.while (%arg6 = %c0_i32, %arg7 = %6, %arg8 = %5, %arg9 = %cst_5, %arg10 = %cst_6) : (i32, vector<8x128xf32>, vector<8x128xf32>, f32, f32) -> (i32, vector<8x128xf32>, vector<8x128xf32>, f32, f32) {
      %c51_i32 = arith.constant 51 : i32
      %14 = arith.cmpi slt, %arg6, %c51_i32 : i32
      %cst_12 = arith.constant 9.99999993E-9 : f32
      %15 = arith.mulf %cst_12, %arg10 : f32
      %16 = arith.cmpf oge, %arg9, %15 : f32
      %17 = arith.andi %14, %16 : i1
      scf.condition(%17) %arg6, %arg7, %arg8, %arg9, %arg10 : i32, vector<8x128xf32>, vector<8x128xf32>, f32, f32
    } do {
    ^bb0(%arg6: i32, %arg7: vector<8x128xf32>, %arg8: vector<8x128xf32>, %arg9: f32, %arg10: f32):
      %cst_12 = arith.constant dense<0.000000e+00> : vector<8x128xf32>
      %14 = tpu.matmul %arg8, %0, %cst_12 {dimension_numbers = #tpu.dot_dimension_numbers<[1], [0], [0], [1], [0, 0, 1, 1], [], []>, precision = #tpu.contract_precision<fp32>} : vector<8x128xf32>, vector<128x128xf32>, vector<8x128xf32> -> vector<8x128xf32>
      %15 = arith.addf %14, %4 : vector<8x128xf32>
      %16 = math.tanh %15 : vector<8x128xf32>
      %17 = arith.subf %arg8, %arg7 : vector<8x128xf32>
      %18 = arith.mulf %17, %17 : vector<8x128xf32>
      %19 = vector.shape_cast %18 : vector<8x128xf32> to vector<1x8x128xf32>
      %cst_13 = arith.constant dense<0.000000e+00> : vector<1xf32>
      %20 = vector.multi_reduction <add>, %19, %cst_13 [1, 2] : vector<1x8x128xf32> to vector<1xf32>
      %21 = vector.shape_cast %20 : vector<1xf32> to vector<1x1x1xf32>
      %22 = vector.extract %21[0, 0, 0] : f32 from vector<1x1x1xf32>
      %23 = arith.mulf %arg8, %arg8 : vector<8x128xf32>
      %24 = vector.shape_cast %23 : vector<8x128xf32> to vector<1x8x128xf32>
      %cst_14 = arith.constant dense<0.000000e+00> : vector<1xf32>
      %25 = vector.multi_reduction <add>, %24, %cst_14 [1, 2] : vector<1x8x128xf32> to vector<1xf32>
      %26 = vector.shape_cast %25 : vector<1xf32> to vector<1x1x1xf32>
      %27 = vector.extract %26[0, 0, 0] : f32 from vector<1x1x1xf32>
      %c1_i32 = arith.constant 1 : i32
      %28 = arith.addi %arg6, %c1_i32 : i32
      scf.yield %28, %arg8, %16, %22, %27 : i32, vector<8x128xf32>, vector<8x128xf32>, f32, f32
    }
    %c0_7 = arith.constant 0 : index
    %c0_8 = arith.constant 0 : index
    %8 = vector.load %arg4[%c0_7, %c0_8] : memref<8x128xf32, #tpu.memory_space<vmem>>, vector<8x128xf32>
    tpu.vector_store %arg4[%c0_7, %c0_8], %7#2 {strides = array<i32>} : memref<8x128xf32, #tpu.memory_space<vmem>>, vector<8x128xf32>,
    %9 = math.sqrt %7#3 : f32
    %10 = math.sqrt %7#4 : f32
    %cst_9 = arith.constant 9.99999974E-6 : f32
    %11 = arith.addf %cst_9, %10 : f32
    %12 = arith.divf %9, %11 : f32
    %c0_10 = arith.constant 0 : index
    %c0_11 = arith.constant 0 : index
    %13 = memref.load %arg5[%c0_10, %c0_11] : memref<1x1xf32, #tpu.memory_space<smem>>
    memref.store %12, %arg5[%c0_10, %c0_11] : memref<1x1xf32, #tpu.memory_space<smem>>
    return
  }
  func.func @transform_0(%arg0: i32) -> (i32, i32) {
    %c0_i32 = arith.constant 0 : i32
    %c0_i32_0 = arith.constant 0 : i32
    %c0_i32_1 = arith.constant 0 : i32
    return %c0_i32, %c0_i32_0 : i32, i32
  }
  func.func @transform_1(%arg0: i32) -> (i32, i32) {
    %c0_i32 = arith.constant 0 : i32
    %c0_i32_0 = arith.constant 0 : i32
    %c0_i32_1 = arith.constant 0 : i32
    return %c0_i32, %c0_i32_0 : i32, i32
  }
  func.func @transform_2(%arg0: i32) -> (i32, i32) {
    %c0_i32 = arith.constant 0 : i32
    %c0_i32_0 = arith.constant 0 : i32
    %c0_i32_1 = arith.constant 0 : i32
    return %c0_i32, %c0_i32_0 : i32, i32
  }
  func.func @transform_3(%arg0: i32) -> (i32, i32) {
    %c0_i32 = arith.constant 0 : i32
    %c0_i32_0 = arith.constant 0 : i32
    %c0_i32_1 = arith.constant 0 : i32
    return %c0_i32, %c0_i32_0 : i32, i32
  }
  func.func @transform_4(%arg0: i32) -> (i32, i32) {
    %c0_i32 = arith.constant 0 : i32
    %c0_i32_0 = arith.constant 0 : i32
    %c0_i32_1 = arith.constant 0 : i32
    return %c0_i32, %c0_i32_0 : i32, i32
  }
}

</mosaic_0001>

<llo_original>
// kernel: tpu_custom_call.1
$region0: #{tpu_custom_call.1}
  #allocation0 [shape = 'u32[]', space=smem, size = 0x4, offset = 0x4, fixed_abs, tag = 'smem constant byte address 0x4 - core index']
  #allocation1 [shape = 'u32[144,128]{1,0:T(1,128)}', space=vmem, size = 0x12000, scoped, tag = 'internal scratch']
  %s0 = inlined_call_operand.hbm [shape: f32[8,128], index: 0, kind: input, shape index: {}]
  %s1 = inlined_call_operand.hbm [shape: f32[128,128], index: 1, kind: input, shape index: {}]
  %s2 = inlined_call_operand.vmem [shape: f32[1,128], index: 2, kind: input, shape index: {}]
  %s3 = inlined_call_operand.hbm [shape: f32[8,128], index: 3, kind: output, shape index: {0}]
  %s4 = inlined_call_operand.hbm [shape: f32[1,1], index: 4, kind: output, shape index: {1}]
  %5 = xla_tuple %s3, %s4
  %s6 = sld [smem:[#allocation0]]
  $region45: #{tpu_custom_call.1} parent=0
    _
  %s8 = ssub.s32 1, %s6
  %s9 = scalar_select 0, %s8, %s6
  $region1: #{tpu_custom_call.1} parent=0
    #allocation2 [shape = 'u8[4096]{0}', space=vmem, size = 0x1000, scoped, tag = 'input window, operand 0, single buffered']
    #allocation3 [shape = 's32[1]{0}', space=sflag, size = 0x4, scoped, tag = 'scoped memory for tpu_custom_call.1']
    #allocation4 [shape = 's32[1]{0}', space=sflag, size = 0x4, scoped, tag = 'scoped memory for tpu_custom_call.1']
    #allocation5 [shape = 's32[1]{0}', space=sflag, size = 0x4, scoped, tag = 'scoped memory for tpu_custom_call.1']
    #allocation6 [shape = 'u8[65536]{0}', space=vmem, size = 0x10000, scoped, tag = 'input window, operand 1, single buffered']
    #allocation7 [shape = 's32[1]{0}', space=sflag, size = 0x4, scoped, tag = 'scoped memory for tpu_custom_call.1']
    #allocation8 [shape = 'u8[4096]{0}', space=vmem, size = 0x1000, scoped, tag = 'output window, operand 0, single buffered']
    #allocation9 [shape = 'u8[512]{0}', space=smem, size = 0x200, scoped, tag = 'output window, operand 1, single buffered']
    %10 = vsyncpa [#allocation3], 0
    %11 = vsyncpa [#allocation7], 0
    %12 = vsyncpa [#allocation4], 0
    %13 = vsyncpa [#allocation5], 0
    // Predicated region
    $region2: #{tpu_custom_call.1} parent=1 // pred_check
      _
    $region3: #{tpu_custom_call.1} parent=1 // pred_check_branch
      %15 = sbr.rel (0) target = $region5
    $region4: #{tpu_custom_call.1} parent=1 // pred_region
      %s17 = ssub.s32 128, 128
      %18 = vsyncadd [#allocation3], %s17
      %s20 = sshll.u32 [#allocation2], 4
      %s21 = int_to_ptr.vmem [resolvable:$true] %s20
      %23 = dma.hbm_to_vmem [thread:$0]  %s0, 128, %s21, [#allocation3]
    $region5: #{tpu_custom_call.1} parent=1 // pred_fallthru
      _
    // Predicated region
    $region6: #{tpu_custom_call.1} parent=1 // pred_check
      _
    $region7: #{tpu_custom_call.1} parent=1 // pred_check_branch
      %25 = sbr.rel (0) target = $region9
    $region8: #{tpu_custom_call.1} parent=1 // pred_region
      %s27 = ssub.s32 2048, 2048
      %28 = vsyncadd [#allocation7], %s27
      %s29 = sshll.u32 [#allocation6], 4
      %s30 = int_to_ptr.vmem [resolvable:$true] %s29
      %35 = dma.hbm_to_vmem [thread:$0]  %s1, 2048, %s30, [#allocation7], 128, 128, 8
    $region9: #{tpu_custom_call.1} parent=1 // pred_fallthru
      _
    // Predicated region
    $region10: #{tpu_custom_call.1} parent=1 // pred_check
      _
    $region11: #{tpu_custom_call.1} parent=1 // pred_check_branch
      %37 = sbr.rel (0) target = $region13
    $region12: #{tpu_custom_call.1} parent=1 // pred_region
      _
    $region13: #{tpu_custom_call.1} parent=1 // pred_fallthru
      _
    // Predicated region
    $region14: #{tpu_custom_call.1} parent=1 // pred_check
      _
    $region15: #{tpu_custom_call.1} parent=1 // pred_check_branch
      %39 = sbr.rel (0) target = $region17
    $region16: #{tpu_custom_call.1} parent=1 // pred_region
      %40 = dma.done [#allocation3], 128
    $region17: #{tpu_custom_call.1} parent=1 // pred_fallthru
      _
    // Predicated region
    $region18: #{tpu_custom_call.1} parent=1 // pred_check
      _
    $region19: #{tpu_custom_call.1} parent=1 // pred_check_branch
      %42 = sbr.rel (0) target = $region21
    $region20: #{tpu_custom_call.1} parent=1 // pred_region
      %43 = dma.done [#allocation7], 2048
    $region21: #{tpu_custom_call.1} parent=1 // pred_fallthru
      _
    %v44 = vld [vmem:[#allocation6] sm:$0xff]
    %v45 = vld [vmem:[#allocation6 + $0x8] sm:$0xff]
    %v46 = vld [vmem:[#allocation6 + $0x10] sm:$0xff]
    %v47 = vld [vmem:[#allocation6 + $0x18] sm:$0xff]
    %v48 = vld [vmem:[#allocation6 + $0x20] sm:$0xff]
    %v49 = vld [vmem:[#allocation6 + $0x28] sm:$0xff]
    %v50 = vld [vmem:[#allocation6 + $0x30] sm:$0xff]
    %v51 = vld [vmem:[#allocation6 + $0x38] sm:$0xff]
    %v52 = vld [vmem:[#allocation6 + $0x40] sm:$0xff]
    %v53 = vld [vmem:[#allocation6 + $0x48] sm:$0xff]
    %v54 = vld [vmem:[#allocation6 + $0x50] sm:$0xff]
    %v55 = vld [vmem:[#allocation6 + $0x58] sm:$0xff]
    %v56 = vld [vmem:[#allocation6 + $0x60] sm:$0xff]
    %v57 = vld [vmem:[#allocation6 + $0x68] sm:$0xff]
    %v58 = vld [vmem:[#allocation6 + $0x70] sm:$0xff]
    %v59 = vld [vmem:[#allocation6 + $0x78] sm:$0xff]
    %v60 = vld [vmem:[%s2] sm:$0x1]
    %v61 = vld [vmem:[#allocation2] sm:$0xff]
    %v63 = vlaneseq
    %v64 = vshrl.u32 %v63, 7
    %v65 = vsub.s32 0, %v64
    %v66 = vrot.slane %v60, %v65
    %v68 = vadd.f32 %v66, %v61
    %v69 = vtanh.pop %v68
    // While loop
    $region22: #{tpu_custom_call.1} parent=1 // loop_pre_header
      _
    $region23: #{tpu_custom_call.1} parent=1 // loop_header
      %s71 = sphi 0, %s746
      %v72 = vphi 0.0, %v73
      %v73 = vphi %v69, %v724
      %s74 = sphi 1.0, %s735
      %s75 = sphi 0.0, %s745
      %p76 = scmp.lt.s32.totalorder %s71, 51
      %s77 = smul.f32 %s75, 1e-08
      %p78 = scmp.ge.f32.partialorder %s74, %s77
      %p79 = pnand %p76, %p78
      %p80 = pneg %p79
    $region24: #{tpu_custom_call.1} parent=1 // loop_header_branch
      %82 = sbr.rel (%p79) target = $region28
    $region25: #{tpu_custom_call.1} parent=1 // loop_body
      %83 = vmatprep.subr.mxu0 0.0
      %v84 = vand.u32 %v59, 4294901760
      %85 = vmatpush1.msra.mxu0 %v84
      %86 = vmatprep.subr.mxu0 0.0
      %v87 = vand.u32 %v58, 4294901760
      %88 = vmatpush1.msra.mxu0 %v87
      %89 = vmatprep.subr.mxu0 0.0
      %v90 = vand.u32 %v57, 4294901760
      %91 = vmatpush1.msra.mxu0 %v90
      %92 = vmatprep.subr.mxu0 0.0
      %v93 = vand.u32 %v56, 4294901760
      %94 = vmatpush1.msra.mxu0 %v93
      %95 = vmatprep.subr.mxu0 0.0
      %v96 = vand.u32 %v55, 4294901760
      %97 = vmatpush1.msra.mxu0 %v96
      %98 = vmatprep.subr.mxu0 0.0
      %v99 = vand.u32 %v54, 4294901760
      %100 = vmatpush1.msra.mxu0 %v99
      %101 = vmatprep.subr.mxu0 0.0
      %v102 = vand.u32 %v53, 4294901760
      %103 = vmatpush1.msra.mxu0 %v102
      %104 = vmatprep.subr.mxu0 0.0
      %v105 = vand.u32 %v52, 4294901760
      %106 = vmatpush1.msra.mxu0 %v105
      %107 = vmatprep.subr.mxu0 0.0
      %v108 = vand.u32 %v51, 4294901760
      %109 = vmatpush1.msra.mxu0 %v108
      %110 = vmatprep.subr.mxu0 0.0
      %v111 = vand.u32 %v50, 4294901760
      %112 = vmatpush1.msra.mxu0 %v111
      %113 = vmatprep.subr.mxu0 0.0
      %v114 = vand.u32 %v49, 4294901760
      %115 = vmatpush1.msra.mxu0 %v114
      %116 = vmatprep.subr.mxu0 0.0
      %v117 = vand.u32 %v48, 4294901760
      %118 = vmatpush1.msra.mxu0 %v117
      %119 = vmatprep.subr.mxu0 0.0
      %v120 = vand.u32 %v47, 4294901760
      %121 = vmatpush1.msra.mxu0 %v120
      %122 = vmatprep.subr.mxu0 0.0
      %v123 = vand.u32 %v46, 4294901760
      %124 = vmatpush1.msra.mxu0 %v123
      %125 = vmatprep.subr.mxu0 0.0
      %v126 = vand.u32 %v45, 4294901760
      %127 = vmatpush1.msra.mxu0 %v126
      %128 = vmatprep.subr.mxu0 0.0
      %v129 = vand.u32 %v44, 4294901760
      %130 = vmatpush1.msra.mxu0 %v129
      %131 = vmatprep.subr.mxu0 0.0
      %132 = vmatpush2.msra.mxu0 0.0
      %133 = vmatprep.subr.mxu0 0.0
      %134 = vmatpush2.msra.mxu0 0.0
      %135 = vmatprep.subr.mxu0 0.0
      %136 = vmatpush2.msra.mxu0 0.0
      %137 = vmatprep.subr.mxu0 0.0
      %138 = vmatpush2.msra.mxu0 0.0
      %139 = vmatprep.subr.mxu0 0.0
      %140 = vmatpush2.msra.mxu0 0.0
      %141 = vmatprep.subr.mxu0 0.0
      %142 = vmatpush2.msra.mxu0 0.0
      %143 = vmatprep.subr.mxu0 0.0
      %144 = vmatpush2.msra.mxu0 0.0
      %145 = vmatprep.subr.mxu0 0.0
      %146 = vmatpush2.msra.mxu0 0.0
      %147 = vmatprep.subr.mxu0 0.0
      %148 = vmatpush2.msra.mxu0 0.0
      %149 = vmatprep.subr.mxu0 0.0
      %150 = vmatpush2.msra.mxu0 0.0
      %151 = vmatprep.subr.mxu0 0.0
      %152 = vmatpush2.msra.mxu0 0.0
      %153 = vmatprep.subr.mxu0 0.0
      %154 = vmatpush2.msra.mxu0 0.0
      %155 = vmatprep.subr.mxu0 0.0
      %156 = vmatpush2.msra.mxu0 0.0
      %157 = vmatprep.subr.mxu0 0.0
      %158 = vmatpush2.msra.mxu0 0.0
      %159 = vmatprep.subr.mxu0 0.0
      %160 = vmatpush2.msra.mxu0 0.0
      %161 = vmatprep.subr.mxu0 0.0
      %162 = vmatpush2.msra.mxu0 0.0
      %163 = vmatprep.mubr.f32.mxu0 0.0
      %v164 = vand.u32 %v73, 4294901760
      %v165 = vsub.f32 %v73, %v164
      %v166 = vand.u32 %v165, 4294901760
      %v167 = vsub.f32 %v165, %v166
      %v168 = vand.u32 %v167, 4294901760
      %169 = vmatmul.mubr.f32.gmra.mxu0 %v168
      %v170 = vpop.f32.mrf.mxu0
      %v171 = vadd.f32 %v68, %v170
      %v172 = vpop.f32.mrf.mxu0
      %173 = vdwg.mxu0
      %174 = vmatprep.subr.mxu0 0.0
      %v175 = vand.u32 %v59, 4294901760
      %v176 = vsub.f32 %v59, %v175
      %v177 = vand.u32 %v176, 4294901760
      %v178 = vsub.f32 %v176, %v177
      %v179 = vand.u32 %v178, 4294901760
      %180 = vmatpush1.msra.mxu0 %v179
      %181 = vmatprep.subr.mxu0 0.0
      %v182 = vand.u32 %v58, 4294901760
      %v183 = vsub.f32 %v58, %v182
      %v184 = vand.u32 %v183, 4294901760
      %v185 = vsub.f32 %v183, %v184
      %v186 = vand.u32 %v185, 4294901760
      %187 = vmatpush1.msra.mxu0 %v186
      %188 = vmatprep.subr.mxu0 0.0
      %v189 = vand.u32 %v57, 4294901760
      %v190 = vsub.f32 %v57, %v189
      %v191 = vand.u32 %v190, 4294901760
      %v192 = vsub.f32 %v190, %v191
      %v193 = vand.u32 %v192, 4294901760
      %194 = vmatpush1.msra.mxu0 %v193
      %195 = vmatprep.subr.mxu0 0.0
      %v196 = vand.u32 %v56, 4294901760
      %v197 = vsub.f32 %v56, %v196
      %v198 = vand.u32 %v197, 4294901760
      %v199 = vsub.f32 %v197, %v198
      %v200 = vand.u32 %v199, 4294901760
      %201 = vmatpush1.msra.mxu0 %v200
      %202 = vmatprep.subr.mxu0 0.0
      %v203 = vand.u32 %v55, 4294901760
      %v204 = vsub.f32 %v55, %v203
      %v205 = vand.u32 %v204, 4294901760
      %v206 = vsub.f32 %v204, %v205
      %v207 = vand.u32 %v206, 4294901760
      %208 = vmatpush1.msra.mxu0 %v207
      %209 = vmatprep.subr.mxu0 0.0
      %v210 = vand.u32 %v54, 4294901760
      %v211 = vsub.f32 %v54, %v210
      %v212 = vand.u32 %v211, 4294901760
      %v213 = vsub.f32 %v211, %v212
      %v214 = vand.u32 %v213, 4294901760
      %215 = vmatpush1.msra.mxu0 %v214
      %216 = vmatprep.subr.mxu0 0.0
      %v217 = vand.u32 %v53, 4294901760
      %v218 = vsub.f32 %v53, %v217
      %v219 = vand.u32 %v218, 4294901760
      %v220 = vsub.f32 %v218, %v219
      %v221 = vand.u32 %v220, 4294901760
      %222 = vmatpush1.msra.mxu0 %v221
      %223 = vmatprep.subr.mxu0 0.0
      %v224 = vand.u32 %v52, 4294901760
      %v225 = vsub.f32 %v52, %v224
      %v226 = vand.u32 %v225, 4294901760
      %v227 = vsub.f32 %v225, %v226
      %v228 = vand.u32 %v227, 4294901760
      %229 = vmatpush1.msra.mxu0 %v228
      %230 = vmatprep.subr.mxu0 0.0
      %v231 = vand.u32 %v51, 4294901760
      %v232 = vsub.f32 %v51, %v231
      %v233 = vand.u32 %v232, 4294901760
      %v234 = vsub.f32 %v232, %v233
      %v235 = vand.u32 %v234, 4294901760
      %236 = vmatpush1.msra.mxu0 %v235
      %237 = vmatprep.subr.mxu0 0.0
      %v238 = vand.u32 %v50, 4294901760
      %v239 = vsub.f32 %v50, %v238
      %v240 = vand.u32 %v239, 4294901760
      %v241 = vsub.f32 %v239, %v240
      %v242 = vand.u32 %v241, 4294901760
      %243 = vmatpush1.msra.mxu0 %v242
      %244 = vmatprep.subr.mxu0 0.0
      %v245 = vand.u32 %v49, 4294901760
      %v246 = vsub.f32 %v49, %v245
      %v247 = vand.u32 %v246, 4294901760
      %v248 = vsub.f32 %v246, %v247
      %v249 = vand.u32 %v248, 4294901760
      %250 = vmatpush1.msra.mxu0 %v249
      %251 = vmatprep.subr.mxu0 0.0
      %v252 = vand.u32 %v48, 4294901760
      %v253 = vsub.f32 %v48, %v252
      %v254 = vand.u32 %v253, 4294901760
      %v255 = vsub.f32 %v253, %v254
      %v256 = vand.u32 %v255, 4294901760
      %257 = vmatpush1.msra.mxu0 %v256
      %258 = vmatprep.subr.mxu0 0.0
      %v259 = vand.u32 %v47, 4294901760
      %v260 = vsub.f32 %v47, %v259
      %v261 = vand.u32 %v260, 4294901760
      %v262 = vsub.f32 %v260, %v261
      %v263 = vand.u32 %v262, 4294901760
      %264 = vmatpush1.msra.mxu0 %v263
      %265 = vmatprep.subr.mxu0 0.0
      %v266 = vand.u32 %v46, 4294901760
      %v267 = vsub.f32 %v46, %v266
      %v268 = vand.u32 %v267, 4294901760
      %v269 = vsub.f32 %v267, %v268
      %v270 = vand.u32 %v269, 4294901760
      %271 = vmatpush1.msra.mxu0 %v270
      %272 = vmatprep.subr.mxu0 0.0
      %v273 = vand.u32 %v45, 4294901760
      %v274 = vsub.f32 %v45, %v273
      %v275 = vand.u32 %v274, 4294901760
      %v276 = vsub.f32 %v274, %v275
      %v277 = vand.u32 %v276, 4294901760
      %278 = vmatpush1.msra.mxu0 %v277
      %279 = vmatprep.subr.mxu0 0.0
      %v280 = vand.u32 %v44, 4294901760
      %v281 = vsub.f32 %v44, %v280
      %v282 = vand.u32 %v281, 4294901760
      %v283 = vsub.f32 %v281, %v282
      %v284 = vand.u32 %v283, 4294901760
      %285 = vmatpush1.msra.mxu0 %v284
      %286 = vmatprep.subr.mxu0 0.0
      %287 = vmatpush2.msra.mxu0 0.0
      %288 = vmatprep.subr.mxu0 0.0
      %289 = vmatpush2.msra.mxu0 0.0
      %290 = vmatprep.subr.mxu0 0.0
      %291 = vmatpush2.msra.mxu0 0.0
      %292 = vmatprep.subr.mxu0 0.0
      %293 = vmatpush2.msra.mxu0 0.0
      %294 = vmatprep.subr.mxu0 0.0
      %295 = vmatpush2.msra.mxu0 0.0
      %296 = vmatprep.subr.mxu0 0.0
      %297 = vmatpush2.msra.mxu0 0.0
      %298 = vmatprep.subr.mxu0 0.0
      %299 = vmatpush2.msra.mxu0 0.0
      %300 = vmatprep.subr.mxu0 0.0
      %301 = vmatpush2.msra.mxu0 0.0
      %302 = vmatprep.subr.mxu0 0.0
      %303 = vmatpush2.msra.mxu0 0.0
      %304 = vmatprep.subr.mxu0 0.0
      %305 = vmatpush2.msra.mxu0 0.0
      %306 = vmatprep.subr.mxu0 0.0
      %307 = vmatpush2.msra.mxu0 0.0
      %308 = vmatprep.subr.mxu0 0.0
      %309 = vmatpush2.msra.mxu0 0.0
      %310 = vmatprep.subr.mxu0 0.0
      %311 = vmatpush2.msra.mxu0 0.0
      %312 = vmatprep.subr.mxu0 0.0
      %313 = vmatpush2.msra.mxu0 0.0
      %314 = vmatprep.subr.mxu0 0.0
      %315 = vmatpush2.msra.mxu0 0.0
      %316 = vmatprep.subr.mxu0 0.0
      %317 = vmatpush2.msra.mxu0 0.0
      %318 = vmatprep.mubr.f32.mxu0 0.0
      %v319 = vand.u32 %v73, 4294901760
      %320 = vmatmul.mubr.f32.gmra.mxu0 %v319
      %v321 = vpop.f32.mrf.mxu0
      %v322 = vadd.f32 %v171, %v321
      %v323 = vpop.f32.mrf.mxu0
      %324 = vdwg.mxu0
      %325 = vmatprep.subr.mxu0 0.0
      %v326 = vand.u32 %v59, 4294901760
      %v327 = vsub.f32 %v59, %v326
      %328 = vmatpush1.msra.mxu0 %v327
      %329 = vmatprep.subr.mxu0 0.0
      %v330 = vand.u32 %v58, 4294901760
      %v331 = vsub.f32 %v58, %v330
      %332 = vmatpush1.msra.mxu0 %v331
      %333 = vmatprep.subr.mxu0 0.0
      %v334 = vand.u32 %v57, 4294901760
      %v335 = vsub.f32 %v57, %v334
      %336 = vmatpush1.msra.mxu0 %v335
      %337 = vmatprep.subr.mxu0 0.0
      %v338 = vand.u32 %v56, 4294901760
      %v339 = vsub.f32 %v56, %v338
      %340 = vmatpush1.msra.mxu0 %v339
      %341 = vmatprep.subr.mxu0 0.0
      %v342 = vand.u32 %v55, 4294901760
      %v343 = vsub.f32 %v55, %v342
      %344 = vmatpush1.msra.mxu0 %v343
      %345 = vmatprep.subr.mxu0 0.0
      %v346 = vand.u32 %v54, 4294901760
      %v347 = vsub.f32 %v54, %v346
      %348 = vmatpush1.msra.mxu0 %v347
      %349 = vmatprep.subr.mxu0 0.0
      %v350 = vand.u32 %v53, 4294901760
      %v351 = vsub.f32 %v53, %v350
      %352 = vmatpush1.msra.mxu0 %v351
      %353 = vmatprep.subr.mxu0 0.0
      %v354 = vand.u32 %v52, 4294901760
      %v355 = vsub.f32 %v52, %v354
      %356 = vmatpush1.msra.mxu0 %v355
      %357 = vmatprep.subr.mxu0 0.0
      %v358 = vand.u32 %v51, 4294901760
      %v359 = vsub.f32 %v51, %v358
      %360 = vmatpush1.msra.mxu0 %v359
      %361 = vmatprep.subr.mxu0 0.0
      %v362 = vand.u32 %v50, 4294901760
      %v363 = vsub.f32 %v50, %v362
      %364 = vmatpush1.msra.mxu0 %v363
      %365 = vmatprep.subr.mxu0 0.0
      %v366 = vand.u32 %v49, 4294901760
      %v367 = vsub.f32 %v49, %v366
      %368 = vmatpush1.msra.mxu0 %v367
      %369 = vmatprep.subr.mxu0 0.0
      %v370 = vand.u32 %v48, 4294901760
      %v371 = vsub.f32 %v48, %v370
      %372 = vmatpush1.msra.mxu0 %v371
      %373 = vmatprep.subr.mxu0 0.0
      %v374 = vand.u32 %v47, 4294901760
      %v375 = vsub.f32 %v47, %v374
      %376 = vmatpush1.msra.mxu0 %v375
      %377 = vmatprep.subr.mxu0 0.0
      %v378 = vand.u32 %v46, 4294901760
      %v379 = vsub.f32 %v46, %v378
      %380 = vmatpush1.msra.mxu0 %v379
      %381 = vmatprep.subr.mxu0 0.0
      %v382 = vand.u32 %v45, 4294901760
      %v383 = vsub.f32 %v45, %v382
      %384 = vmatpush1.msra.mxu0 %v383
      %385 = vmatprep.subr.mxu0 0.0
      %v386 = vand.u32 %v44, 4294901760
      %v387 = vsub.f32 %v44, %v386
      %388 = vmatpush1.msra.mxu0 %v387
      %389 = vmatprep.subr.mxu0 0.0
      %390 = vmatpush2.msra.mxu0 0.0
      %391 = vmatprep.subr.mxu0 0.0
      %392 = vmatpush2.msra.mxu0 0.0
      %393 = vmatprep.subr.mxu0 0.0
      %394 = vmatpush2.msra.mxu0 0.0
      %395 = vmatprep.subr.mxu0 0.0
      %396 = vmatpush2.msra.mxu0 0.0
      %397 = vmatprep.subr.mxu0 0.0
      %398 = vmatpush2.msra.mxu0 0.0
      %399 = vmatprep.subr.mxu0 0.0
      %400 = vmatpush2.msra.mxu0 0.0
      %401 = vmatprep.subr.mxu0 0.0
      %402 = vmatpush2.msra.mxu0 0.0
      %403 = vmatprep.subr.mxu0 0.0
      %404 = vmatpush2.msra.mxu0 0.0
      %405 = vmatprep.subr.mxu0 0.0
      %406 = vmatpush2.msra.mxu0 0.0
      %407 = vmatprep.subr.mxu0 0.0
      %408 = vmatpush2.msra.mxu0 0.0
      %409 = vmatprep.subr.mxu0 0.0
      %410 = vmatpush2.msra.mxu0 0.0
      %411 = vmatprep.subr.mxu0 0.0
      %412 = vmatpush2.msra.mxu0 0.0
      %413 = vmatprep.subr.mxu0 0.0
      %414 = vmatpush2.msra.mxu0 0.0
      %415 = vmatprep.subr.mxu0 0.0
      %416 = vmatpush2.msra.mxu0 0.0
      %417 = vmatprep.subr.mxu0 0.0
      %418 = vmatpush2.msra.mxu0 0.0
      %419 = vmatprep.subr.mxu0 0.0
      %420 = vmatpush2.msra.mxu0 0.0
      %421 = vmatprep.mubr.f32.mxu0 0.0
      %v422 = vand.u32 %v73, 4294901760
      %v423 = vsub.f32 %v73, %v422
      %424 = vmatmul.mubr.f32.gmra.mxu0 %v423
      %v425 = vpop.f32.mrf.mxu0
      %v426 = vadd.f32 %v322, %v425
      %v427 = vpop.f32.mrf.mxu0
      %428 = vdwg.mxu0
      %429 = vmatprep.subr.mxu0 0.0
      %v430 = vand.u32 %v59, 4294901760
      %431 = vmatpush1.msra.mxu0 %v430
      %432 = vmatprep.subr.mxu0 0.0
      %v433 = vand.u32 %v58, 4294901760
      %434 = vmatpush1.msra.mxu0 %v433
      %435 = vmatprep.subr.mxu0 0.0
      %v436 = vand.u32 %v57, 4294901760
      %437 = vmatpush1.msra.mxu0 %v436
      %438 = vmatprep.subr.mxu0 0.0
      %v439 = vand.u32 %v56, 4294901760
      %440 = vmatpush1.msra.mxu0 %v439
      %441 = vmatprep.subr.mxu0 0.0
      %v442 = vand.u32 %v55, 4294901760
      %443 = vmatpush1.msra.mxu0 %v442
      %444 = vmatprep.subr.mxu0 0.0
      %v445 = vand.u32 %v54, 4294901760
      %446 = vmatpush1.msra.mxu0 %v445
      %447 = vmatprep.subr.mxu0 0.0
      %v448 = vand.u32 %v53, 4294901760
      %449 = vmatpush1.msra.mxu0 %v448
      %450 = vmatprep.subr.mxu0 0.0
      %v451 = vand.u32 %v52, 4294901760
      %452 = vmatpush1.msra.mxu0 %v451
      %453 = vmatprep.subr.mxu0 0.0
      %v454 = vand.u32 %v51, 4294901760
      %455 = vmatpush1.msra.mxu0 %v454
      %456 = vmatprep.subr.mxu0 0.0
      %v457 = vand.u32 %v50, 4294901760
      %458 = vmatpush1.msra.mxu0 %v457
      %459 = vmatprep.subr.mxu0 0.0
      %v460 = vand.u32 %v49, 4294901760
      %461 = vmatpush1.msra.mxu0 %v460
      %462 = vmatprep.subr.mxu0 0.0
      %v463 = vand.u32 %v48, 4294901760
      %464 = vmatpush1.msra.mxu0 %v463
      %465 = vmatprep.subr.mxu0 0.0
      %v466 = vand.u32 %v47, 4294901760
      %467 = vmatpush1.msra.mxu0 %v466
      %468 = vmatprep.subr.mxu0 0.0
      %v469 = vand.u32 %v46, 4294901760
      %470 = vmatpush1.msra.mxu0 %v469
      %471 = vmatprep.subr.mxu0 0.0
      %v472 = vand.u32 %v45, 4294901760
      %473 = vmatpush1.msra.mxu0 %v472
      %474 = vmatprep.subr.mxu0 0.0
      %v475 = vand.u32 %v44, 4294901760
      %476 = vmatpush1.msra.mxu0 %v475
      %477 = vmatprep.subr.mxu0 0.0
      %478 = vmatpush2.msra.mxu0 0.0
      %479 = vmatprep.subr.mxu0 0.0
      %480 = vmatpush2.msra.mxu0 0.0
      %481 = vmatprep.subr.mxu0 0.0
      %482 = vmatpush2.msra.mxu0 0.0
      %483 = vmatprep.subr.mxu0 0.0
      %484 = vmatpush2.msra.mxu0 0.0
      %485 = vmatprep.subr.mxu0 0.0
      %486 = vmatpush2.msra.mxu0 0.0
      %487 = vmatprep.subr.mxu0 0.0
      %488 = vmatpush2.msra.mxu0 0.0
      %489 = vmatprep.subr.mxu0 0.0
      %490 = vmatpush2.msra.mxu0 0.0
      %491 = vmatprep.subr.mxu0 0.0
      %492 = vmatpush2.msra.mxu0 0.0
      %493 = vmatprep.subr.mxu0 0.0
      %494 = vmatpush2.msra.mxu0 0.0
      %495 = vmatprep.subr.mxu0 0.0
      %496 = vmatpush2.msra.mxu0 0.0
      %497 = vmatprep.subr.mxu0 0.0
      %498 = vmatpush2.msra.mxu0 0.0
      %499 = vmatprep.subr.mxu0 0.0
      %500 = vmatpush2.msra.mxu0 0.0
      %501 = vmatprep.subr.mxu0 0.0
      %502 = vmatpush2.msra.mxu0 0.0
      %503 = vmatprep.subr.mxu0 0.0
      %504 = vmatpush2.msra.mxu0 0.0
      %505 = vmatprep.subr.mxu0 0.0
      %506 = vmatpush2.msra.mxu0 0.0
      %507 = vmatprep.subr.mxu0 0.0
      %508 = vmatpush2.msra.mxu0 0.0
      %509 = vmatprep.mubr.f32.mxu0 0.0
      %v510 = vand.u32 %v73, 4294901760
      %v511 = vsub.f32 %v73, %v510
      %v512 = vand.u32 %v511, 4294901760
      %513 = vmatmul.mubr.f32.gmra.mxu0 %v512
      %v514 = vpop.f32.mrf.mxu0
      %v515 = vadd.f32 %v426, %v514
      %v516 = vpop.f32.mrf.mxu0
      %517 = vdwg.mxu0
      %518 = vmatprep.subr.mxu0 0.0
      %v519 = vand.u32 %v59, 4294901760
      %v520 = vsub.f32 %v59, %v519
      %v521 = vand.u32 %v520, 4294901760
      %522 = vmatpush1.msra.mxu0 %v521
      %523 = vmatprep.subr.mxu0 0.0
      %v524 = vand.u32 %v58, 4294901760
      %v525 = vsub.f32 %v58, %v524
      %v526 = vand.u32 %v525, 4294901760
      %527 = vmatpush1.msra.mxu0 %v526
      %528 = vmatprep.subr.mxu0 0.0
      %v529 = vand.u32 %v57, 4294901760
      %v530 = vsub.f32 %v57, %v529
      %v531 = vand.u32 %v530, 4294901760
      %532 = vmatpush1.msra.mxu0 %v531
      %533 = vmatprep.subr.mxu0 0.0
      %v534 = vand.u32 %v56, 4294901760
      %v535 = vsub.f32 %v56, %v534
      %v536 = vand.u32 %v535, 4294901760
      %537 = vmatpush1.msra.mxu0 %v536
      %538 = vmatprep.subr.mxu0 0.0
      %v539 = vand.u32 %v55, 4294901760
      %v540 = vsub.f32 %v55, %v539
      %v541 = vand.u32 %v540, 4294901760
      %542 = vmatpush1.msra.mxu0 %v541
      %543 = vmatprep.subr.mxu0 0.0
      %v544 = vand.u32 %v54, 4294901760
      %v545 = vsub.f32 %v54, %v544
      %v546 = vand.u32 %v545, 4294901760
      %547 = vmatpush1.msra.mxu0 %v546
      %548 = vmatprep.subr.mxu0 0.0
      %v549 = vand.u32 %v53, 4294901760
      %v550 = vsub.f32 %v53, %v549
      %v551 = vand.u32 %v550, 4294901760
      %552 = vmatpush1.msra.mxu0 %v551
      %553 = vmatprep.subr.mxu0 0.0
      %v554 = vand.u32 %v52, 4294901760
      %v555 = vsub.f32 %v52, %v554
      %v556 = vand.u32 %v555, 4294901760
      %557 = vmatpush1.msra.mxu0 %v556
      %558 = vmatprep.subr.mxu0 0.0
      %v559 = vand.u32 %v51, 4294901760
      %v560 = vsub.f32 %v51, %v559
      %v561 = vand.u32 %v560, 4294901760
      %562 = vmatpush1.msra.mxu0 %v561
      %563 = vmatprep.subr.mxu0 0.0
      %v564 = vand.u32 %v50, 4294901760
      %v565 = vsub.f32 %v50, %v564
      %v566 = vand.u32 %v565, 4294901760
      %567 = vmatpush1.msra.mxu0 %v566
      %568 = vmatprep.subr.mxu0 0.0
      %v569 = vand.u32 %v49, 4294901760
      %v570 = vsub.f32 %v49, %v569
      %v571 = vand.u32 %v570, 4294901760
      %572 = vmatpush1.msra.mxu0 %v571
      %573 = vmatprep.subr.mxu0 0.0
      %v574 = vand.u32 %v48, 4294901760
      %v575 = vsub.f32 %v48, %v574
      %v576 = vand.u32 %v575, 4294901760
      %577 = vmatpush1.msra.mxu0 %v576
      %578 = vmatprep.subr.mxu0 0.0
      %v579 = vand.u32 %v47, 4294901760
      %v580 = vsub.f32 %v47, %v579
      %v581 = vand.u32 %v580, 4294901760
      %582 = vmatpush1.msra.mxu0 %v581
      %583 = vmatprep.subr.mxu0 0.0
      %v584 = vand.u32 %v46, 4294901760
      %v585 = vsub.f32 %v46, %v584
      %v586 = vand.u32 %v585, 4294901760
      %587 = vmatpush1.msra.mxu0 %v586
      %588 = vmatprep.subr.mxu0 0.0
      %v589 = vand.u32 %v45, 4294901760
      %v590 = vsub.f32 %v45, %v589
      %v591 = vand.u32 %v590, 4294901760
      %592 = vmatpush1.msra.mxu0 %v591
      %593 = vmatprep.subr.mxu0 0.0
      %v594 = vand.u32 %v44, 4294901760
      %v595 = vsub.f32 %v44, %v594
      %v596 = vand.u32 %v595, 4294901760
      %597 = vmatpush1.msra.mxu0 %v596
      %598 = vmatprep.subr.mxu0 0.0
      %599 = vmatpush2.msra.mxu0 0.0
      %600 = vmatprep.subr.mxu0 0.0
      %601 = vmatpush2.msra.mxu0 0.0
      %602 = vmatprep.subr.mxu0 0.0
      %603 = vmatpush2.msra.mxu0 0.0
      %604 = vmatprep.subr.mxu0 0.0
      %605 = vmatpush2.msra.mxu0 0.0
      %606 = vmatprep.subr.mxu0 0.0
      %607 = vmatpush2.msra.mxu0 0.0
      %608 = vmatprep.subr.mxu0 0.0
      %609 = vmatpush2.msra.mxu0 0.0
      %610 = vmatprep.subr.mxu0 0.0
      %611 = vmatpush2.msra.mxu0 0.0
      %612 = vmatprep.subr.mxu0 0.0
      %613 = vmatpush2.msra.mxu0 0.0
      %614 = vmatprep.subr.mxu0 0.0
      %615 = vmatpush2.msra.mxu0 0.0
      %616 = vmatprep.subr.mxu0 0.0
      %617 = vmatpush2.msra.mxu0 0.0
      %618 = vmatprep.subr.mxu0 0.0
      %619 = vmatpush2.msra.mxu0 0.0
      %620 = vmatprep.subr.mxu0 0.0
      %621 = vmatpush2.msra.mxu0 0.0
      %622 = vmatprep.subr.mxu0 0.0
      %623 = vmatpush2.msra.mxu0 0.0
      %624 = vmatprep.subr.mxu0 0.0
      %625 = vmatpush2.msra.mxu0 0.0
      %626 = vmatprep.subr.mxu0 0.0
      %627 = vmatpush2.msra.mxu0 0.0
      %628 = vmatprep.subr.mxu0 0.0
      %629 = vmatpush2.msra.mxu0 0.0
      %630 = vmatprep.mubr.f32.mxu0 0.0
      %v631 = vand.u32 %v73, 4294901760
      %632 = vmatmul.mubr.f32.gmra.mxu0 %v631
      %v633 = vpop.f32.mrf.mxu0
      %v634 = vadd.f32 %v515, %v633
      %v635 = vpop.f32.mrf.mxu0
      %636 = vdwg.mxu0
      %637 = vmatprep.subr.mxu0 0.0
      %v638 = vand.u32 %v59, 4294901760
      %639 = vmatpush1.msra.mxu0 %v638
      %640 = vmatprep.subr.mxu0 0.0
      %v641 = vand.u32 %v58, 4294901760
      %642 = vmatpush1.msra.mxu0 %v641
      %643 = vmatprep.subr.mxu0 0.0
      %v644 = vand.u32 %v57, 4294901760
      %645 = vmatpush1.msra.mxu0 %v644
      %646 = vmatprep.subr.mxu0 0.0
      %v647 = vand.u32 %v56, 4294901760
      %648 = vmatpush1.msra.mxu0 %v647
      %649 = vmatprep.subr.mxu0 0.0
      %v650 = vand.u32 %v55, 4294901760
      %651 = vmatpush1.msra.mxu0 %v650
      %652 = vmatprep.subr.mxu0 0.0
      %v653 = vand.u32 %v54, 4294901760
      %654 = vmatpush1.msra.mxu0 %v653
      %655 = vmatprep.subr.mxu0 0.0
      %v656 = vand.u32 %v53, 4294901760
      %657 = vmatpush1.msra.mxu0 %v656
      %658 = vmatprep.subr.mxu0 0.0
      %v659 = vand.u32 %v52, 4294901760
      %660 = vmatpush1.msra.mxu0 %v659
      %661 = vmatprep.subr.mxu0 0.0
      %v662 = vand.u32 %v51, 4294901760
      %663 = vmatpush1.msra.mxu0 %v662
      %664 = vmatprep.subr.mxu0 0.0
      %v665 = vand.u32 %v50, 4294901760
      %666 = vmatpush1.msra.mxu0 %v665
      %667 = vmatprep.subr.mxu0 0.0
      %v668 = vand.u32 %v49, 4294901760
      %669 = vmatpush1.msra.mxu0 %v668
      %670 = vmatprep.subr.mxu0 0.0
      %v671 = vand.u32 %v48, 4294901760
      %672 = vmatpush1.msra.mxu0 %v671
      %673 = vmatprep.subr.mxu0 0.0
      %v674 = vand.u32 %v47, 4294901760
      %675 = vmatpush1.msra.mxu0 %v674
      %676 = vmatprep.subr.mxu0 0.0
      %v677 = vand.u32 %v46, 4294901760
      %678 = vmatpush1.msra.mxu0 %v677
      %679 = vmatprep.subr.mxu0 0.0
      %v680 = vand.u32 %v45, 4294901760
      %681 = vmatpush1.msra.mxu0 %v680
      %682 = vmatprep.subr.mxu0 0.0
      %v683 = vand.u32 %v44, 4294901760
      %684 = vmatpush1.msra.mxu0 %v683
      %685 = vmatprep.subr.mxu0 0.0
      %686 = vmatpush2.msra.mxu0 0.0
      %687 = vmatprep.subr.mxu0 0.0
      %688 = vmatpush2.msra.mxu0 0.0
      %689 = vmatprep.subr.mxu0 0.0
      %690 = vmatpush2.msra.mxu0 0.0
      %691 = vmatprep.subr.mxu0 0.0
      %692 = vmatpush2.msra.mxu0 0.0
      %693 = vmatprep.subr.mxu0 0.0
      %694 = vmatpush2.msra.mxu0 0.0
      %695 = vmatprep.subr.mxu0 0.0
      %696 = vmatpush2.msra.mxu0 0.0
      %697 = vmatprep.subr.mxu0 0.0
      %698 = vmatpush2.msra.mxu0 0.0
      %699 = vmatprep.subr.mxu0 0.0
      %700 = vmatpush2.msra.mxu0 0.0
      %701 = vmatprep.subr.mxu0 0.0
      %702 = vmatpush2.msra.mxu0 0.0
      %703 = vmatprep.subr.mxu0 0.0
      %704 = vmatpush2.msra.mxu0 0.0
      %705 = vmatprep.subr.mxu0 0.0
      %706 = vmatpush2.msra.mxu0 0.0
      %707 = vmatprep.subr.mxu0 0.0
      %708 = vmatpush2.msra.mxu0 0.0
      %709 = vmatprep.subr.mxu0 0.0
      %710 = vmatpush2.msra.mxu0 0.0
      %711 = vmatprep.subr.mxu0 0.0
      %712 = vmatpush2.msra.mxu0 0.0
      %713 = vmatprep.subr.mxu0 0.0
      %714 = vmatpush2.msra.mxu0 0.0
      %715 = vmatprep.subr.mxu0 0.0
      %716 = vmatpush2.msra.mxu0 0.0
      %717 = vmatprep.mubr.f32.mxu0 0.0
      %v718 = vand.u32 %v73, 4294901760
      %719 = vmatmul.mubr.f32.gmra.mxu0 %v718
      %v720 = vpop.f32.mrf.mxu0
      %v721 = vadd.f32 %v634, %v720
      %v722 = vpop.f32.mrf.mxu0
      %723 = vdwg.mxu0
      %v724 = vtanh.pop %v721
      %v725 = vsub.f32 %v73, %v72
      %v726 = vmul.f32 %v725, %v725
      %727 = vadd.xlane.f32.xlu0 %v726
      %v728 = vpop.xlane.xlu0 %727
      %v729 = vrot.slane %v728, 4
      %v730 = vadd.f32 %v728, %v729
      %v731 = vrot.slane %v730, 2
      %v732 = vadd.f32 %v730, %v731
      %v733 = vrot.slane %v732, 1
      %v734 = vadd.f32 %v732, %v733
      %s735 = vtos %v734
      %v736 = vmul.f32 %v73, %v73
      %737 = vadd.xlane.f32.xlu0 %v736
      %v738 = vpop.xlane.xlu0 %737
      %v739 = vrot.slane %v738, 4
      %v740 = vadd.f32 %v738, %v739
      %v741 = vrot.slane %v740, 2
      %v742 = vadd.f32 %v740, %v741
      %v743 = vrot.slane %v742, 1
      %v744 = vadd.f32 %v742, %v743
      %s745 = vtos %v744
      %s746 = sadd.s32 %s71, 1
    $region26: #{tpu_custom_call.1} parent=1 // loop_footer
      _
    $region27: #{tpu_custom_call.1} parent=1 // loop_footer_branch
      %70 = sbr.rel target = $region23
    $region28: #{tpu_custom_call.1} parent=1 // loop_exit
      _
    %747 = vst [vmem:[#allocation8] sm:$0xff] %v73
    %v748 = vstv %s74
    %v749 = vrsqrt.pop %v748
    %v750 = vmul.f32 %v748, %v749
    %vm751 = vcmp.eq.f32.partialorder %v748, inf
    %v752 = vsel %vm751, %v748, %v750
    %vm753 = vcmp.eq.f32.partialorder %v748, 0.0
    %v754 = vand.u32 %v748, 2147483648
    %v755 = vsel %vm753, %v754, %v752
    %s756 = vtos %v755
    %v757 = vstv %s75
    %v758 = vrsqrt.pop %v757
    %v759 = vmul.f32 %v757, %v758
    %vm760 = vcmp.eq.f32.partialorder %v757, inf
    %v761 = vsel %vm760, %v757, %v759
    %vm762 = vcmp.eq.f32.partialorder %v757, 0.0
    %v763 = vand.u32 %v757, 2147483648
    %v764 = vsel %vm762, %v763, %v761
    %s765 = vtos %v764
    %s766 = sadd.f32 %s765, 1e-05
    %v767 = vstv %s766
    %v768 = vrcp.pop %v767
    %s769 = vtos %v768
    %s770 = smul.f32 %s756, %s769
    %s771 = scalar_lea.smem [#allocation9], 0
    %772 = sst [smem:[%s771]] %s770
    // Predicated region
    $region29: #{tpu_custom_call.1} parent=1 // pred_check
      _
    $region30: #{tpu_custom_call.1} parent=1 // pred_check_branch
      %774 = sbr.rel (0) target = $region32
    $region31: #{tpu_custom_call.1} parent=1 // pred_region
      %s776 = ssub.s32 128, 128
      %777 = vsyncadd [#allocation4], %s776
      %s779 = sshll.u32 [#allocation8], 4
      %s780 = int_to_ptr.vmem [resolvable:$true] %s779
      %782 = dma.vmem_to_hbm [thread:$0]  %s780, 128, %s3, [#allocation4]
    $region32: #{tpu_custom_call.1} parent=1 // pred_fallthru
      _
    // Predicated region
    $region33: #{tpu_custom_call.1} parent=1 // pred_check
      _
    $region34: #{tpu_custom_call.1} parent=1 // pred_check_branch
      %784 = sbr.rel (0) target = $region36
    $region35: #{tpu_custom_call.1} parent=1 // pred_region
      %s786 = ssub.s32 16, 16
      %787 = vsyncadd [#allocation5], %s786
      %790 = dma.smem_to_hbm [#allocation9], 16, %s4, [#allocation5]
    $region36: #{tpu_custom_call.1} parent=1 // pred_fallthru
      _
    // Predicated region
    $region37: #{tpu_custom_call.1} parent=1 // pred_check
      _
    $region38: #{tpu_custom_call.1} parent=1 // pred_check_branch
      %792 = sbr.rel (0) target = $region40
    $region39: #{tpu_custom_call.1} parent=1 // pred_region
      %793 = dma.done [#allocation4], 128
    $region40: #{tpu_custom_call.1} parent=1 // pred_fallthru
      _
    // Predicated region
    $region41: #{tpu_custom_call.1} parent=1 // pred_check
      _
    $region42: #{tpu_custom_call.1} parent=1 // pred_check_branch
      %795 = sbr.rel (0) target = $region44
    $region43: #{tpu_custom_call.1} parent=1 // pred_region
      %796 = dma.done [#allocation5], 16
    $region44: #{tpu_custom_call.1} parent=1 // pred_fallthru
      _
    %797 = sfence
    %798 = vsyncpa [#allocation3], 1
    %799 = vsyncpa [#allocation7], 1
    %800 = vsyncpa [#allocation4], 1
    %801 = vsyncpa [#allocation5], 1

</llo_original>
